<compile_context>
chip_gen: v6e
topology: v6e:2x2x1
jax: 0.10.0
libtpu: 0.0.40
codegen_flags: <defaults>
</compile_context>

<pallas_src>
import functools
import math

import jax
import jax.numpy as jnp
import numpy as np
from jax import lax
from jax.experimental import pallas as pl
from jax.experimental.pallas import tpu as pltpu


# ---------------------------------------------------------------------------
# Parameter / buffer setup (plain JAX): identical math to the PyTorch __init__.
# ---------------------------------------------------------------------------
def make_positional_encoding(d_model: int, max_len: int = 5000) -> jnp.ndarray:
    position = np.arange(0.0, max_len, dtype=np.float32)[:, None]           # (L, 1)
    div_term = np.exp(
        np.arange(0.0, d_model, 2, dtype=np.float32) * -(math.log(10000.0) / d_model)
    )                                                                        # (D/2,)
    pe = np.zeros((max_len, d_model), dtype=np.float32)
    pe[:, 0::2] = np.sin(position * div_term)
    pe[:, 1::2] = np.cos(position * div_term)
    return jnp.asarray(pe)                                                   # (L, D)


# ---------------------------------------------------------------------------
# Counter-based dropout PRNG (pure int32 ops -> lowers on TPU and in interpret)
# ---------------------------------------------------------------------------
def _i32(x: int) -> int:
    """Python uint32 constant -> the Python int with the same int32 bit pattern."""
    x &= 0xFFFFFFFF
    return x - (1 << 32) if x >= (1 << 31) else x


_GOLD = _i32(0x9E3779B9)
_MIX1 = _i32(0x85EBCA6B)
_MIX2 = _i32(0xC2B2AE35)


def _lsr(x, k):
    """Logical (zero-fill) right shift on int32 via arithmetic shift + mask."""
    return (x >> k) & ((1 << (32 - k)) - 1)


def _dropout_keep_mask(shape, seed, block_offset, drop_threshold_31):
    """murmur3-fmix32 over the global element index; P(keep) = 1 - p."""
    ts, b, d = shape
    i0 = lax.broadcasted_iota(jnp.int32, shape, 0)
    i1 = lax.broadcasted_iota(jnp.int32, shape, 1)
    i2 = lax.broadcasted_iota(jnp.int32, shape, 2)
    ctr = block_offset + (i0 * b + i1) * d + i2          # unique per output element
    x = ctr ^ (seed * _GOLD)                             # fold the seed in (int32 wrap)
    x = (x ^ _lsr(x, 16)) * _MIX1
    x = (x ^ _lsr(x, 13)) * _MIX2
    x = x ^ _lsr(x, 16)
    r = x & 0x7FFFFFFF                                   # uniform in [0, 2^31)
    return r >= drop_threshold_31


# ---------------------------------------------------------------------------
# Pallas kernels
# ---------------------------------------------------------------------------
def _gather_plus_pe(ids_ref, emb_ref, pe_ref):
    """(TS*B, 1) ids -> one batched one-hot MXU gather -> (TS, B, D) + PE."""
    n = ids_ref.shape[0]                                 # TS * B (MXU M dim)
    ts, d = pe_ref.shape
    b = n // ts
    table = emb_ref[...]                                 # (V, D), VMEM-resident
    vocab = table.shape[0]
    onehot = (ids_ref[...] ==
              lax.broadcasted_iota(jnp.int32, (n, vocab), 1)).astype(table.dtype)
    emb = jnp.dot(onehot, table, preferred_element_type=jnp.float32)   # (TS*B, D)
    # Split the leading dim back to (TS, B, D); D (lanes) is untouched, and for
    # B a multiple of 8 the layout is unchanged, so the single full-block store
    # in the caller stays lane- and sublane-dense.
    return emb.reshape(ts, b, d) + pe_ref[...].astype(jnp.float32)[:, None, :]


def _embed_pe_kernel(seed_ref, ids_ref, emb_ref, pe_ref, o_ref):
    """Eval mode: embedding gather (one-hot MXU matmul) + positional add."""
    del seed_ref                                         # dropout disabled
    o_ref[...] = _gather_plus_pe(ids_ref, emb_ref, pe_ref).astype(o_ref.dtype)


def _embed_pe_dropout_kernel(seed_ref, ids_ref, emb_ref, pe_ref, o_ref, *,
                             drop_threshold_31, scale):
    """Training mode: embedding + positional add + fused inverted dropout."""
    y = _gather_plus_pe(ids_ref, emb_ref, pe_ref)        # (TS, B, D) f32
    ts, b, d = o_ref.shape
    block_offset = pl.program_id(0) * (ts * b * d)       # global element counter base
    keep = _dropout_keep_mask((ts, b, d), seed_ref[0], block_offset,
                              drop_threshold_31)
    o_ref[...] = jnp.where(keep, y * scale, 0.0).astype(o_ref.dtype)


# ---------------------------------------------------------------------------
# Wrapper
# ---------------------------------------------------------------------------
def _pick_block_seq(seq_len, batch, d_model, itemsize=4, target_bytes=4 * 1024 * 1024):
    """TS: multiple of 8, divides S, (TS, B, D) block <= ~target_bytes.

    Prefer TS*B a multiple of 256 (native MXU M dim on v6e/v7x), and keep the
    grid >= 2 steps so the "parallel" axis can feed both v7x TensorCores.
    (On v5e/v6e with 128 MiB VMEM, target_bytes can be raised to ~8 MiB.)
    """
    bytes_per_row = max(1, batch * d_model * itemsize)
    max_rows = max(8, target_bytes // bytes_per_row)
    cands = [ts for ts in range(8, seq_len + 1, 8)
             if seq_len % ts == 0 and ts <= max_rows]
    if not cands:
        return seq_len
    aligned = [ts for ts in cands if (ts * batch) % 256 == 0]
    ts = max(aligned) if aligned else max(cands)
    if ts == seq_len:                        # grid would collapse to a single step
        smaller = [c for c in cands if c < seq_len]
        smaller_aligned = [c for c in smaller if (c * batch) % 256 == 0]
        if smaller_aligned:
            ts = max(smaller_aligned)
        elif smaller:
            ts = max(smaller)
    return ts


def _table_spec(vocab, d_model):
    """(V, D) table pinned to block (0, 0): DMA'd once, ideally single-buffered."""
    index_map = lambda i, seed_ref: (0, 0)
    if hasattr(pl, "Buffered"):
        try:
            return pl.BlockSpec((vocab, d_model), index_map,
                                pipeline_mode=pl.Buffered(1))
        except TypeError:                    # older JAX without pipeline_mode kwarg
            pass
    return pl.BlockSpec((vocab, d_model), index_map)


def transformer_embedding_forward(token_ids, emb_table, pe, *, dropout_p=0.1,
                                  training=False, seed=0, block_seq=None,
                                  out_dtype=None):
    """token_ids: (S, B) int32; emb_table: (V, D); pe: (max_len, D) or (max_len, 1, D)."""
    S, B = token_ids.shape
    V, D = emb_table.shape
    if pe.ndim == 3:                         # accept torch-style (max_len, 1, D) buffer
        pe = pe[:, 0, :]
    out_dtype = out_dtype or emb_table.dtype
    pe_s = pe[:S]                            # (S, D)

    if training and dropout_p >= 1.0:        # torch Dropout(p=1.0) zeroes everything
        return jnp.zeros((S, B, D), out_dtype)

    if block_seq is None:
        block_seq = _pick_block_seq(S, B, D, jnp.dtype(out_dtype).itemsize)
    assert S % block_seq == 0, "block_seq must divide seq_len"
    grid = (S // block_seq,)

    if training and dropout_p > 0.0:
        # drop iff hash31 < threshold  =>  P(drop) = p (31 bits of hash entropy)
        thr = min(int(round(float(dropout_p) * 2.0 ** 31)), 2 ** 31 - 1)
        kernel = functools.partial(_embed_pe_dropout_kernel,
                                   drop_threshold_31=thr,
                                   scale=1.0 / (1.0 - float(dropout_p)))
    else:
        kernel = _embed_pe_kernel

    # Row-major (S, B) -> (S*B, 1) is a free layout-preserving reshape; it lets the
    # kernel do one (TS*B, V) x (V, D) matmul and one dense (TS, B, D) block store.
    ids_flat = token_ids.reshape(S * B, 1).astype(jnp.int32)

    grid_spec = pltpu.PrefetchScalarGridSpec(
        num_scalar_prefetch=1,                                            # seed -> SMEM
        grid=grid,
        in_specs=[
            pl.BlockSpec((block_seq * B, 1), lambda i, seed_ref: (i, 0)),  # flat ids
            _table_spec(V, D),                                             # (V, D) pinned
            pl.BlockSpec((block_seq, D), lambda i, seed_ref: (i, 0)),      # PE rows
        ],
        out_specs=pl.BlockSpec((block_seq, B, D), lambda i, seed_ref: (i, 0, 0)),
    )

    seed_arr = jnp.asarray([seed], dtype=jnp.int32)
    return pl.pallas_call(
        kernel,
        out_shape=jax.ShapeDtypeStruct((S, B, D), out_dtype),
        grid_spec=grid_spec,
        compiler_params=pltpu.CompilerParams(
            dimension_semantics=("parallel",),        # megacore-shardable on v7x
            vmem_limit_bytes=48 * 1024 * 1024,        # below v7x's 64 MiB physical VMEM
        ),
    )(seed_arr, ids_flat, emb_table, pe_s)


# ---------------------------------------------------------------------------
# Demo / self-test
# ---------------------------------------------------------------------------
if __name__ == "__main__":
    vocab_size = 64
    d_model = 128          # multiple of 128 -> lane-dense output stores
    seq_len = 64
    batch = 8              # multiple of 8 -> sublane-dense (TS, B, D) block stores
    dropout_p = 0.1

    key = jax.random.PRNGKey(0)
    k_ids, k_emb = jax.random.split(key)
    token_ids = jax.random.randint(k_ids, (seq_len, batch), 0, vocab_size, dtype=jnp.int32)
    emb_table = jax.random.normal(k_emb, (vocab_size, d_model), dtype=jnp.float32)
    # bf16-representable values -> the one-hot MXU gather is exact even on the
    # single-pass bf16 MXU path (bf16 tables also work and halve VMEM residency).
    emb_table = emb_table.astype(jnp.bfloat16).astype(jnp.float32)

    pe = make_positional_encoding(d_model, max_len=5000)
    ref = jnp.take(emb_table, token_ids, axis=0) + pe[:seq_len][:, None, :]

    # ---- eval mode (dropout = identity): deterministic check ----------------
    out = transformer_embedding_forward(token_ids, emb_table, pe,
                                        dropout_p=dropout_p, training=False)
    out = jax.block_until_ready(out)
    assert out.shape == (seq_len, batch, d_model)
    assert np.allclose(np.asarray(out), np.asarray(ref), atol=1e-5, rtol=1e-5), \
        "Pallas output does not match reference"

    # ---- training mode (fused inverted dropout) ------------------------------
    out_tr = transformer_embedding_forward(token_ids, emb_table, pe,
                                           dropout_p=dropout_p, training=True,
                                           seed=123)
    out_tr = jax.block_until_ready(out_tr)
    out_np, ref_np = np.asarray(out_tr), np.asarray(ref)
    assert out_np.shape == (seq_len, batch, d_model)
    assert np.isfinite(out_np).all()
    dropped = out_np == 0.0
    frac = float(dropped.mean())
    assert 0.02 < frac < 0.25, f"drop fraction {frac} inconsistent with p={dropout_p}"
    kept = ~dropped
    keep_scale = 1.0 / (1.0 - dropout_p)
    assert np.allclose(out_np[kept], ref_np[kept] * keep_scale, atol=1e-4, rtol=1e-4), \
        "kept elements are not scaled copies of the reference"

    print("KERNEL_OK")
</pallas_src>

<mosaic_0001>
module attributes {stable_mosaic.version = 11 : i64} {
  func.func @_embed_pe_kernel(%arg0: i32, %arg1: memref<1xi32, #tpu.memory_space<smem>>, %arg2: memref<256x1xi32, #tpu.memory_space<vmem>>, %arg3: memref<64x128xf32, #tpu.memory_space<vmem>>, %arg4: memref<32x128xf32, #tpu.memory_space<vmem>>, %arg5: memref<32x8x128xf32, #tpu.memory_space<vmem>>) attributes {dimension_semantics = [#tpu.dimension_semantics<parallel>], iteration_bounds = array<i64: 2>, scalar_prefetch = 1 : i64, scratch_operands = 0 : i64, tpu.core_type = #tpu.core_type<tc>, window_params = [{transform_indices = @transform_0, window_bounds = array<i64: 256, 1>}, {pipeline_mode = #tpu.pipeline_mode<synchronous>, transform_indices = @transform_1, window_bounds = array<i64: 64, 128>}, {transform_indices = @transform_2, window_bounds = array<i64: 32, 128>}, {transform_indices = @transform_3, window_bounds = array<i64: 32, 8, 128>}]} {
    %c0 = arith.constant 0 : index
    %c0_0 = arith.constant 0 : index
    %0 = vector.load %arg3[%c0, %c0_0] : memref<64x128xf32, #tpu.memory_space<vmem>>, vector<64x128xf32>
    %c0_1 = arith.constant 0 : index
    %c0_2 = arith.constant 0 : index
    %1 = vector.load %arg2[%c0_1, %c0_2] : memref<256x1xi32, #tpu.memory_space<vmem>>, vector<256x1xi32>
    %2 = tpu.iota {dimensions = array<i32: 1>} : vector<256x64xi32>
    %3 = vector.broadcast %1 : vector<256x1xi32> to vector<256x64xi32>
    %4 = arith.cmpi eq, %3, %2 : vector<256x64xi32>
    %5 = arith.extui %4 : vector<256x64xi1> to vector<256x64xi32>
    %6 = arith.sitofp %5 : vector<256x64xi32> to vector<256x64xf32>
    %cst = arith.constant dense<0.000000e+00> : vector<256x128xf32>
    %7 = tpu.matmul %6, %0, %cst {dimension_numbers = #tpu.dot_dimension_numbers<[1], [0], [0], [1], [0, 0, 1, 1], [], []>} : vector<256x64xf32>, vector<64x128xf32>, vector<256x128xf32> -> vector<256x128xf32>
    %8 = vector.shape_cast %7 : vector<256x128xf32> to vector<32x8x128xf32>
    %c0_3 = arith.constant 0 : index
    %c0_4 = arith.constant 0 : index
    %9 = vector.load %arg4[%c0_3, %c0_4] : memref<32x128xf32, #tpu.memory_space<vmem>>, vector<32x128xf32>
    %10 = vector.shape_cast %9 : vector<32x128xf32> to vector<32x1x128xf32>
    %11 = vector.broadcast %10 : vector<32x1x128xf32> to vector<32x8x128xf32>
    %12 = arith.addf %8, %11 : vector<32x8x128xf32>
    %c0_5 = arith.constant 0 : index
    %c0_6 = arith.constant 0 : index
    %c0_7 = arith.constant 0 : index
    %13 = vector.load %arg5[%c0_5, %c0_6, %c0_7] : memref<32x8x128xf32, #tpu.memory_space<vmem>>, vector<32x8x128xf32>
    tpu.vector_store %arg5[%c0_5, %c0_6, %c0_7], %12 {strides = array<i32>} : memref<32x8x128xf32, #tpu.memory_space<vmem>>, vector<32x8x128xf32>,
    return
  }
  func.func @transform_0(%arg0: i32, %arg1: memref<1xi32, #tpu.memory_space<smem>>) -> (i32, i32) {
    %c0_i32 = arith.constant 0 : i32
    %c0_i32_0 = arith.constant 0 : i32
    return %arg0, %c0_i32 : i32, i32
  }
  func.func @transform_1(%arg0: i32, %arg1: memref<1xi32, #tpu.memory_space<smem>>) -> (i32, i32) {
    %c0_i32 = arith.constant 0 : i32
    %c0_i32_0 = arith.constant 0 : i32
    %c0_i32_1 = arith.constant 0 : i32
    return %c0_i32, %c0_i32_0 : i32, i32
  }
  func.func @transform_2(%arg0: i32, %arg1: memref<1xi32, #tpu.memory_space<smem>>) -> (i32, i32) {
    %c0_i32 = arith.constant 0 : i32
    %c0_i32_0 = arith.constant 0 : i32
    return %arg0, %c0_i32 : i32, i32
  }
  func.func @transform_3(%arg0: i32, %arg1: memref<1xi32, #tpu.memory_space<smem>>) -> (i32, i32, i32) {
    %c0_i32 = arith.constant 0 : i32
    %c0_i32_0 = arith.constant 0 : i32
    %c0_i32_1 = arith.constant 0 : i32
    return %arg0, %c0_i32, %c0_i32_0 : i32, i32, i32
  }
}

</mosaic_0001>

<llo_original>
// kernel: tpu_custom_call.1
$region0: #{tpu_custom_call.1}
  #allocation0 [shape = 'u32[]', space=smem, size = 0x4, offset = 0x4, fixed_abs, tag = 'smem constant byte address 0x4 - core index']
  #allocation1 [shape = 'u32[144,128]{1,0:T(1,128)}', space=vmem, size = 0x12000, scoped, tag = 'internal scratch']
  #allocation2 [shape = 's32[1]{0}', space=sflag, size = 0x4, scoped, tag = 'scoped memory for tpu_custom_call.1']
  #allocation3 [shape = 's32[1]{0:T(128)S(6)}', space=smem, size = 0x200, scoped, tag = 'prefetched SMEM operand 0']
  %s0 = inlined_call_operand.<no memory space> [shape: s32[1], index: 0, kind: input, shape index: {}]
  %s1 = inlined_call_operand.vmem [shape: s32[512,1], index: 1, kind: input, shape index: {}]
  %s2 = inlined_call_operand.vmem [shape: f32[64,128], index: 2, kind: input, shape index: {}]
  %s3 = inlined_call_operand.vmem [shape: f32[64,128], index: 3, kind: input, shape index: {}]
  %s4 = inlined_call_operand.hbm [shape: f32[64,8,128], index: 4, kind: output, shape index: {}]
  %s5 = sld [smem:[#allocation0]]
  $region45: #{tpu_custom_call.1} parent=0
    _
  %s7 = ssub.s32 1, %s5
  %s8 = scalar_select 0, %s7, %s5
  %9 = sst [smem:[#allocation3]] %s0
  $region1: #{tpu_custom_call.1} parent=0
    #allocation4 [shape = 'u8[262144]{0}', space=vmem, size = 0x40000, scoped, tag = 'output window, operand 0']
    #allocation5 [shape = 's32[2]{0}', space=sflag, size = 0x8, scoped, tag = 'scoped memory for tpu_custom_call.1']
    %10 = vsyncpa [#allocation5], 0
    %s11 = scalar_lea.sflag [#allocation5], 1
    %12 = vsyncpa %s11, 0
    loop: start=0, step=1, limit=4
    $region2: #{tpu_custom_call.1} parent=1 // loop_pre_header
      _
    $region3: #{tpu_custom_call.1} parent=1 // loop_header
      %s14 = sphi 0, %s18
      %p15 = scmp.ge.s32.totalorder %s14, 4
      %s24 = sphi 0, %s26
      %s27 = sphi 0, %s24
      %s28 = sphi 0, %s27
      %s44 = sphi 0, %s28
      %s48 = sphi 0, %s48
      %s50 = sphi 0, %s48
      %s51 = sphi 0, %s50
      %s65 = sphi 0, %s51
      %s71 = sphi 0, %s73
      %s74 = sphi 0, %s71
      %s75 = sphi 0, %s74
      %s91 = sphi 0, %s75
      %s97 = sphi 0, %s99
      %s100 = sphi 0, %s97
      %s101 = sphi 0, %s100
      %s117 = sphi 0, %s101
    $region4: #{tpu_custom_call.1} parent=1 // loop_header_branch
      %17 = sbr.rel (%p15) target = $region8
    $region5: #{tpu_custom_call.1} parent=1 // loop_body
      %s19 = ssub.s32 %s14, 1
      %s20 = ssub.s32 %s14, 2
      %s21 = sadd.s32 %s14, 1
      %s22 = ssub.s32 %s14, %s21
      %p23 = scmp.eq.s32.totalorder %s22, 0
      %s25 = sadd.s32 %s24, 1
      %s26 = scalar_select %p23, %s24, %s25
      %p29 = pneg %p23
      %p30 = scmp.eq.s32.totalorder %s14, 1
      %p31 = por %p29, %p30
      %p32 = scmp.ne.s32.totalorder %s24, %s27
      %p33 = scmp.eq.s32.totalorder %s14, 0
      %p34 = por %p32, %p33
      %p35 = scmp.ne.s32.totalorder %s24, %s27
      %p36 = scmp.eq.s32.totalorder %s19, 1
      %p37 = por %p35, %p36
      %p38 = scmp.ne.s32.totalorder %s27, %s28
      %p39 = scmp.eq.s32.totalorder %s19, 0
      %p40 = por %p38, %p39
      %p41 = scmp.ne.s32.totalorder %s27, %s28
      %p42 = scmp.eq.s32.totalorder %s20, 1
      %p43 = por %p41, %p42
      %p45 = scmp.ne.s32.totalorder %s28, %s44
      %p46 = scmp.eq.s32.totalorder %s20, 0
      %p47 = por %p45, %p46
      %s49 = sadd.s32 %s48, 1
      %p52 = scmp.eq.s32.totalorder %s14, 1
      %p53 = scmp.ne.s32.totalorder %s48, %s50
      %p54 = scmp.eq.s32.totalorder %s14, 0
      %p55 = por %p53, %p54
      %p56 = scmp.ne.s32.totalorder %s48, %s50
      %p57 = scmp.eq.s32.totalorder %s19, 1
      %p58 = por %p56, %p57
      %p59 = scmp.ne.s32.totalorder %s50, %s51
      %p60 = scmp.eq.s32.totalorder %s19, 0
      %p61 = por %p59, %p60
      %p62 = scmp.ne.s32.totalorder %s50, %s51
      %p63 = scmp.eq.s32.totalorder %s20, 1
      %p64 = por %p62, %p63
      %p66 = scmp.ne.s32.totalorder %s51, %s65
      %p67 = scmp.eq.s32.totalorder %s20, 0
      %p68 = por %p66, %p67
      %s69 = ssub.s32 %s14, %s21
      %p70 = scmp.eq.s32.totalorder %s69, 0
      %s72 = sadd.s32 %s71, 1
      %s73 = scalar_select %p70, %s71, %s72
      %p76 = pneg %p70
      %p77 = scmp.eq.s32.totalorder %s14, 1
      %p78 = por %p76, %p77
      %p79 = scmp.ne.s32.totalorder %s71, %s74
      %p80 = scmp.eq.s32.totalorder %s14, 0
      %p81 = por %p79, %p80
      %p82 = scmp.ne.s32.totalorder %s71, %s74
      %p83 = scmp.eq.s32.totalorder %s19, 1
      %p84 = por %p82, %p83
      %p85 = scmp.ne.s32.totalorder %s74, %s75
      %p86 = scmp.eq.s32.totalorder %s19, 0
      %p87 = por %p85, %p86
      %p88 = scmp.ne.s32.totalorder %s74, %s75
      %p89 = scmp.eq.s32.totalorder %s20, 1
      %p90 = por %p88, %p89
      %p92 = scmp.ne.s32.totalorder %s75, %s91
      %p93 = scmp.eq.s32.totalorder %s20, 0
      %p94 = por %p92, %p93
      %s95 = ssub.s32 %s14, %s21
      %p96 = scmp.eq.s32.totalorder %s95, 0
      %s98 = sadd.s32 %s97, 1
      %s99 = scalar_select %p96, %s97, %s98
      %p102 = pneg %p96
      %p103 = scmp.eq.s32.totalorder %s14, 1
      %p104 = por %p102, %p103
      %p105 = scmp.ne.s32.totalorder %s97, %s100
      %p106 = scmp.eq.s32.totalorder %s14, 0
      %p107 = por %p105, %p106
      %p108 = scmp.ne.s32.totalorder %s97, %s100
      %p109 = scmp.eq.s32.totalorder %s19, 1
      %p110 = por %p108, %p109
      %p111 = scmp.ne.s32.totalorder %s100, %s101
      %p112 = scmp.eq.s32.totalorder %s19, 0
      %p113 = por %p111, %p112
      %p114 = scmp.ne.s32.totalorder %s100, %s101
      %p115 = scmp.eq.s32.totalorder %s20, 1
      %p116 = por %p114, %p115
      %p118 = scmp.ne.s32.totalorder %s101, %s117
      %p119 = scmp.eq.s32.totalorder %s20, 0
      %p120 = por %p118, %p119
      %p121 = scmp.le.s32.totalorder 1, %s14
      %p122 = scmp.lt.s32.totalorder %s14, 3
      %p123 = pnand %p121, %p122
      %p124 = pneg %p123
      // Predicated region
      $region9: #{tpu_custom_call.1} parent=5 // pred_check
        _
      $region10: #{tpu_custom_call.1} parent=5 // pred_check_branch
        %126 = sbr.rel (%p123) target = $region12
      $region11: #{tpu_custom_call.1} parent=5 // pred_region
        %s127 = ssub.s32 %s14, 1
        // Predicated region
        $region13: #{tpu_custom_call.1} parent=11 // pred_check
          %p128 = pneg %p61
        $region14: #{tpu_custom_call.1} parent=11 // pred_check_branch
          %130 = sbr.rel (%p128) target = $region16
        $region15: #{tpu_custom_call.1} parent=11 // pred_region
          _
        $region16: #{tpu_custom_call.1} parent=11 // pred_fallthru
          _
      $region12: #{tpu_custom_call.1} parent=5 // pred_fallthru
        _
      %p131 = scmp.lt.s32.totalorder %s14, 2
      // Predicated region
      $region17: #{tpu_custom_call.1} parent=5 // pred_check
        %p132 = pneg %p131
      $region18: #{tpu_custom_call.1} parent=5 // pred_check_branch
        %134 = sbr.rel (%p132) target = $region20
      $region19: #{tpu_custom_call.1} parent=5 // pred_region
        // Predicated region
        $region21: #{tpu_custom_call.1} parent=19 // pred_check
          %p135 = pneg %p34
        $region22: #{tpu_custom_call.1} parent=19 // pred_check_branch
          %137 = sbr.rel (%p135) target = $region24
        $region23: #{tpu_custom_call.1} parent=19 // pred_region
          %s138 = smul.u32 32, %s14
          %p139 = scmp.lt.s32.totalorder %s138, 63
          %s140 = scalar_select %p139, %s138, 63
          %s141 = smul.addr %s140, 8
          %s142 = scalar_lea.vmem %s1, %s141
          %s143 = smul.u32 32, %s14
        $region24: #{tpu_custom_call.1} parent=19 // pred_fallthru
          _
        // Predicated region
        $region25: #{tpu_custom_call.1} parent=19 // pred_check
          %p144 = pneg %p81
        $region26: #{tpu_custom_call.1} parent=19 // pred_check_branch
          %146 = sbr.rel (%p144) target = $region28
        $region27: #{tpu_custom_call.1} parent=19 // pred_region
          %s147 = smul.u32 4, %s14
          %p148 = scmp.lt.s32.totalorder %s147, 7
          %s149 = scalar_select %p148, %s147, 7
          %s150 = smul.addr %s149, 8
          %s151 = scalar_lea.vmem %s3, %s150
          %s152 = smul.u32 4, %s14
        $region28: #{tpu_custom_call.1} parent=19 // pred_fallthru
          _
      $region20: #{tpu_custom_call.1} parent=5 // pred_fallthru
        _
      %p153 = scmp.le.s32.totalorder 1, %s14
      %p154 = scmp.lt.s32.totalorder %s14, 3
      %p155 = pnand %p153, %p154
      %p156 = pneg %p155
      // Predicated region
      $region29: #{tpu_custom_call.1} parent=5 // pred_check
        _
      $region30: #{tpu_custom_call.1} parent=5 // pred_check_branch
        %158 = sbr.rel (%p155) target = $region32
      $region31: #{tpu_custom_call.1} parent=5 // pred_region
        %s159 = ssub.s32 %s14, 1
        %s160 = smul.u32 32, %s19
        %p161 = scmp.lt.s32.totalorder %s160, 63
        %s162 = scalar_select %p161, %s160, 63
        %s163 = smul.addr %s162, 8
        %s164 = scalar_lea.vmem %s1, %s163
        %p165 = pneg %p40
        %p166 = pneg %p37
        %p167 = pneg %p61
        %p168 = pneg %p58
        %s169 = smul.u32 4, %s19
        %p170 = scmp.lt.s32.totalorder %s169, 7
        %s171 = scalar_select %p170, %s169, 7
        %s172 = smul.addr %s171, 8
        %s173 = scalar_lea.vmem %s3, %s172
        %p174 = pneg %p87
        %p175 = pneg %p84
        %p176 = pneg %p113
        %p177 = pneg %p110
        %s178 = sand.u32 %s100, 1
        %s179 = scalar_lea.sflag [#allocation5], %s178
        %s180 = sand.u32 %s100, 1
        %s181 = smul.addr %s180, 256
        %s182 = scalar_lea.vmem [#allocation4], %s181
        %s183 = smul.u32 32, %s19
        %p184 = scmp.lt.s32.totalorder %s183, 63
        %s185 = scalar_select %p184, %s183, 63
        %s186 = smul.addr %s185, 8
        %s187 = scalar_lea.vmem %s1, %s186
        %s188 = smul.u32 32, %s19
        %s189 = smul.u32 4, %s19
        %p190 = scmp.lt.s32.totalorder %s189, 7
        %s191 = scalar_select %p190, %s189, 7
        %s192 = smul.addr %s191, 8
        %s193 = scalar_lea.vmem %s3, %s192
        %s194 = smul.u32 4, %s19
        %s195 = smul.u32 32, %s19
        %v196 = vld [vmem:[%s2] sm:$0xff]
        %v197 = vld [vmem:[%s2 + $0x8] sm:$0xff]
        %v198 = vld [vmem:[%s2 + $0x10] sm:$0xff]
        %v199 = vld [vmem:[%s2 + $0x18] sm:$0xff]
        %v200 = vld [vmem:[%s2 + $0x20] sm:$0xff]
        %v201 = vld [vmem:[%s2 + $0x28] sm:$0xff]
        %v202 = vld [vmem:[%s2 + $0x30] sm:$0xff]
        %v203 = vld [vmem:[%s2 + $0x38] sm:$0xff]
        %v204 = vld [vmem:[%s187] sm:$0xff]
        %v205 = vld [vmem:[%s187 + $0x8] sm:$0xff]
        %v206 = vld [vmem:[%s187 + $0x10] sm:$0xff]
        %v207 = vld [vmem:[%s187 + $0x18] sm:$0xff]
        %v208 = vld [vmem:[%s187 + $0x20] sm:$0xff]
        %v209 = vld [vmem:[%s187 + $0x28] sm:$0xff]
        %v210 = vld [vmem:[%s187 + $0x30] sm:$0xff]
        %v211 = vld [vmem:[%s187 + $0x38] sm:$0xff]
        %v212 = vld [vmem:[%s187 + $0x40] sm:$0xff]
        %v213 = vld [vmem:[%s187 + $0x48] sm:$0xff]
        %v214 = vld [vmem:[%s187 + $0x50] sm:$0xff]
        %v215 = vld [vmem:[%s187 + $0x58] sm:$0xff]
        %v216 = vld [vmem:[%s187 + $0x60] sm:$0xff]
        %v217 = vld [vmem:[%s187 + $0x68] sm:$0xff]
        %v218 = vld [vmem:[%s187 + $0x70] sm:$0xff]
        %v219 = vld [vmem:[%s187 + $0x78] sm:$0xff]
        %v220 = vld [vmem:[%s187 + $0x80] sm:$0xff]
        %v221 = vld [vmem:[%s187 + $0x88] sm:$0xff]
        %v222 = vld [vmem:[%s187 + $0x90] sm:$0xff]
        %v223 = vld [vmem:[%s187 + $0x98] sm:$0xff]
        %v224 = vld [vmem:[%s187 + $0xa0] sm:$0xff]
        %v225 = vld [vmem:[%s187 + $0xa8] sm:$0xff]
        %v226 = vld [vmem:[%s187 + $0xb0] sm:$0xff]
        %v227 = vld [vmem:[%s187 + $0xb8] sm:$0xff]
        %v228 = vld [vmem:[%s187 + $0xc0] sm:$0xff]
        %v229 = vld [vmem:[%s187 + $0xc8] sm:$0xff]
        %v230 = vld [vmem:[%s187 + $0xd0] sm:$0xff]
        %v231 = vld [vmem:[%s187 + $0xd8] sm:$0xff]
        %v232 = vld [vmem:[%s187 + $0xe0] sm:$0xff]
        %v233 = vld [vmem:[%s187 + $0xe8] sm:$0xff]
        %v234 = vld [vmem:[%s187 + $0xf0] sm:$0xff]
        %v235 = vld [vmem:[%s187 + $0xf8] sm:$0xff]
        %v236 = vlaneseq
        %v237 = vand.u32 %v236, 127
        %238 = vset.pattern.permute.xlu0 0
        %239 = vperm.xlu0 %238, %v204
        %v240 = vpop.permute.xlu0 %239
        %241 = vset.pattern.permute.xlu0 0
        %242 = vperm.xlu0 %241, %v205
        %v243 = vpop.permute.xlu0 %242
        %244 = vset.pattern.permute.xlu0 0
        %245 = vperm.xlu0 %244, %v206
        %v246 = vpop.permute.xlu0 %245
        %247 = vset.pattern.permute.xlu0 0
        %248 = vperm.xlu0 %247, %v207
        %v249 = vpop.permute.xlu0 %248
        %250 = vset.pattern.permute.xlu0 0
        %251 = vperm.xlu0 %250, %v208
        %v252 = vpop.permute.xlu0 %251
        %253 = vset.pattern.permute.xlu0 0
        %254 = vperm.xlu0 %253, %v209
        %v255 = vpop.permute.xlu0 %254
        %256 = vset.pattern.permute.xlu0 0
        %257 = vperm.xlu0 %256, %v210
        %v258 = vpop.permute.xlu0 %257
        %259 = vset.pattern.permute.xlu0 0
        %260 = vperm.xlu0 %259, %v211
        %v261 = vpop.permute.xlu0 %260
        %262 = vset.pattern.permute.xlu0 0
        %263 = vperm.xlu0 %262, %v212
        %v264 = vpop.permute.xlu0 %263
        %265 = vset.pattern.permute.xlu0 0
        %266 = vperm.xlu0 %265, %v213
        %v267 = vpop.permute.xlu0 %266
        %268 = vset.pattern.permute.xlu0 0
        %269 = vperm.xlu0 %268, %v214
        %v270 = vpop.permute.xlu0 %269
        %271 = vset.pattern.permute.xlu0 0
        %272 = vperm.xlu0 %271, %v215
        %v273 = vpop.permute.xlu0 %272
        %274 = vset.pattern.permute.xlu0 0
        %275 = vperm.xlu0 %274, %v216
        %v276 = vpop.permute.xlu0 %275
        %277 = vset.pattern.permute.xlu0 0
        %278 = vperm.xlu0 %277, %v217
        %v279 = vpop.permute.xlu0 %278
        %280 = vset.pattern.permute.xlu0 0
        %281 = vperm.xlu0 %280, %v218
        %v282 = vpop.permute.xlu0 %281
        %283 = vset.pattern.permute.xlu0 0
        %284 = vperm.xlu0 %283, %v219
        %v285 = vpop.permute.xlu0 %284
        %286 = vset.pattern.permute.xlu0 0
        %287 = vperm.xlu0 %286, %v220
        %v288 = vpop.permute.xlu0 %287
        %289 = vset.pattern.permute.xlu0 0
        %290 = vperm.xlu0 %289, %v221
        %v291 = vpop.permute.xlu0 %290
        %292 = vset.pattern.permute.xlu0 0
        %293 = vperm.xlu0 %292, %v222
        %v294 = vpop.permute.xlu0 %293
        %295 = vset.pattern.permute.xlu0 0
        %296 = vperm.xlu0 %295, %v223
        %v297 = vpop.permute.xlu0 %296
        %298 = vset.pattern.permute.xlu0 0
        %299 = vperm.xlu0 %298, %v224
        %v300 = vpop.permute.xlu0 %299
        %301 = vset.pattern.permute.xlu0 0
        %302 = vperm.xlu0 %301, %v225
        %v303 = vpop.permute.xlu0 %302
        %304 = vset.pattern.permute.xlu0 0
        %305 = vperm.xlu0 %304, %v226
        %v306 = vpop.permute.xlu0 %305
        %307 = vset.pattern.permute.xlu0 0
        %308 = vperm.xlu0 %307, %v227
        %v309 = vpop.permute.xlu0 %308
        %310 = vset.pattern.permute.xlu0 0
        %311 = vperm.xlu0 %310, %v228
        %v312 = vpop.permute.xlu0 %311
        %313 = vset.pattern.permute.xlu0 0
        %314 = vperm.xlu0 %313, %v229
        %v315 = vpop.permute.xlu0 %314
        %316 = vset.pattern.permute.xlu0 0
        %317 = vperm.xlu0 %316, %v230
        %v318 = vpop.permute.xlu0 %317
        %319 = vset.pattern.permute.xlu0 0
        %320 = vperm.xlu0 %319, %v231
        %v321 = vpop.permute.xlu0 %320
        %322 = vset.pattern.permute.xlu0 0
        %323 = vperm.xlu0 %322, %v232
        %v324 = vpop.permute.xlu0 %323
        %325 = vset.pattern.permute.xlu0 0
        %326 = vperm.xlu0 %325, %v233
        %v327 = vpop.permute.xlu0 %326
        %328 = vset.pattern.permute.xlu0 0
        %329 = vperm.xlu0 %328, %v234
        %v330 = vpop.permute.xlu0 %329
        %331 = vset.pattern.permute.xlu0 0
        %332 = vperm.xlu0 %331, %v235
        %v333 = vpop.permute.xlu0 %332
        %vm334 = vcmp.eq.s32.totalorder %v240, %v237
        %vm335 = vcmp.eq.s32.totalorder %v243, %v237
        %vm336 = vcmp.eq.s32.totalorder %v246, %v237
        %vm337 = vcmp.eq.s32.totalorder %v249, %v237
        %vm338 = vcmp.eq.s32.totalorder %v252, %v237
        %vm339 = vcmp.eq.s32.totalorder %v255, %v237
        %vm340 = vcmp.eq.s32.totalorder %v258, %v237
        %vm341 = vcmp.eq.s32.totalorder %v261, %v237
        %vm342 = vcmp.eq.s32.totalorder %v264, %v237
        %vm343 = vcmp.eq.s32.totalorder %v267, %v237
        %vm344 = vcmp.eq.s32.totalorder %v270, %v237
        %vm345 = vcmp.eq.s32.totalorder %v273, %v237
        %vm346 = vcmp.eq.s32.totalorder %v276, %v237
        %vm347 = vcmp.eq.s32.totalorder %v279, %v237
        %vm348 = vcmp.eq.s32.totalorder %v282, %v237
        %vm349 = vcmp.eq.s32.totalorder %v285, %v237
        %vm350 = vcmp.eq.s32.totalorder %v288, %v237
        %vm351 = vcmp.eq.s32.totalorder %v291, %v237
        %vm352 = vcmp.eq.s32.totalorder %v294, %v237
        %vm353 = vcmp.eq.s32.totalorder %v297, %v237
        %vm354 = vcmp.eq.s32.totalorder %v300, %v237
        %vm355 = vcmp.eq.s32.totalorder %v303, %v237
        %vm356 = vcmp.eq.s32.totalorder %v306, %v237
        %vm357 = vcmp.eq.s32.totalorder %v309, %v237
        %vm358 = vcmp.eq.s32.totalorder %v312, %v237
        %vm359 = vcmp.eq.s32.totalorder %v315, %v237
        %vm360 = vcmp.eq.s32.totalorder %v318, %v237
        %vm361 = vcmp.eq.s32.totalorder %v321, %v237
        %vm362 = vcmp.eq.s32.totalorder %v324, %v237
        %vm363 = vcmp.eq.s32.totalorder %v327, %v237
        %vm364 = vcmp.eq.s32.totalorder %v330, %v237
        %vm365 = vcmp.eq.s32.totalorder %v333, %v237
        %v366 = vsel %vm334, 1, 0
        %v367 = vsel %vm335, 1, 0
        %v368 = vsel %vm336, 1, 0
        %v369 = vsel %vm337, 1, 0
        %v370 = vsel %vm338, 1, 0
        %v371 = vsel %vm339, 1, 0
        %v372 = vsel %vm340, 1, 0
        %v373 = vsel %vm341, 1, 0
        %v374 = vsel %vm342, 1, 0
        %v375 = vsel %vm343, 1, 0
        %v376 = vsel %vm344, 1, 0
        %v377 = vsel %vm345, 1, 0
        %v378 = vsel %vm346, 1, 0
        %v379 = vsel %vm347, 1, 0
        %v380 = vsel %vm348, 1, 0
        %v381 = vsel %vm349, 1, 0
        %v382 = vsel %vm350, 1, 0
        %v383 = vsel %vm351, 1, 0
        %v384 = vsel %vm352, 1, 0
        %v385 = vsel %vm353, 1, 0
        %v386 = vsel %vm354, 1, 0
        %v387 = vsel %vm355, 1, 0
        %v388 = vsel %vm356, 1, 0
        %v389 = vsel %vm357, 1, 0
        %v390 = vsel %vm358, 1, 0
        %v391 = vsel %vm359, 1, 0
        %v392 = vsel %vm360, 1, 0
        %v393 = vsel %vm361, 1, 0
        %v394 = vsel %vm362, 1, 0
        %v395 = vsel %vm363, 1, 0
        %v396 = vsel %vm364, 1, 0
        %v397 = vsel %vm365, 1, 0
        %v398 = vcvt.s32.f32 %v366
        %v399 = vcvt.s32.f32 %v367
        %v400 = vcvt.s32.f32 %v368
        %v401 = vcvt.s32.f32 %v369
        %v402 = vcvt.s32.f32 %v370
        %v403 = vcvt.s32.f32 %v371
        %v404 = vcvt.s32.f32 %v372
        %v405 = vcvt.s32.f32 %v373
        %v406 = vcvt.s32.f32 %v374
        %v407 = vcvt.s32.f32 %v375
        %v408 = vcvt.s32.f32 %v376
        %v409 = vcvt.s32.f32 %v377
        %v410 = vcvt.s32.f32 %v378
        %v411 = vcvt.s32.f32 %v379
        %v412 = vcvt.s32.f32 %v380
        %v413 = vcvt.s32.f32 %v381
        %v414 = vcvt.s32.f32 %v382
        %v415 = vcvt.s32.f32 %v383
        %v416 = vcvt.s32.f32 %v384
        %v417 = vcvt.s32.f32 %v385
        %v418 = vcvt.s32.f32 %v386
        %v419 = vcvt.s32.f32 %v387
        %v420 = vcvt.s32.f32 %v388
        %v421 = vcvt.s32.f32 %v389
        %v422 = vcvt.s32.f32 %v390
        %v423 = vcvt.s32.f32 %v391
        %v424 = vcvt.s32.f32 %v392
        %v425 = vcvt.s32.f32 %v393
        %v426 = vcvt.s32.f32 %v394
        %v427 = vcvt.s32.f32 %v395
        %v428 = vcvt.s32.f32 %v396
        %v429 = vcvt.s32.f32 %v397
        %vm430 = vcmask 523264
        %v432 = vsel %vm430, %v398, 0
        %v435 = vsel %vm430, %v399, 0
        %v438 = vsel %vm430, %v400, 0
        %v441 = vsel %vm430, %v401, 0
        %v444 = vsel %vm430, %v402, 0
        %v447 = vsel %vm430, %v403, 0
        %v450 = vsel %vm430, %v404, 0
        %v453 = vsel %vm430, %v405, 0
        %v456 = vsel %vm430, %v406, 0
        %v459 = vsel %vm430, %v407, 0
        %v462 = vsel %vm430, %v408, 0
        %v465 = vsel %vm430, %v409, 0
        %v468 = vsel %vm430, %v410, 0
        %v471 = vsel %vm430, %v411, 0
        %v474 = vsel %vm430, %v412, 0
        %v477 = vsel %vm430, %v413, 0
        %v480 = vsel %vm430, %v414, 0
        %v483 = vsel %vm430, %v415, 0
        %v486 = vsel %vm430, %v416, 0
        %v489 = vsel %vm430, %v417, 0
        %v492 = vsel %vm430, %v418, 0
        %v495 = vsel %vm430, %v419, 0
        %v498 = vsel %vm430, %v420, 0
        %v501 = vsel %vm430, %v421, 0
        %v504 = vsel %vm430, %v422, 0
        %v507 = vsel %vm430, %v423, 0
        %v510 = vsel %vm430, %v424, 0
        %v513 = vsel %vm430, %v425, 0
        %v516 = vsel %vm430, %v426, 0
        %v519 = vsel %vm430, %v427, 0
        %v522 = vsel %vm430, %v428, 0
        %v525 = vsel %vm430, %v429, 0
        %527 = vmatprep.subr.mxu0 0.0
        %528 = vmatpush1.msra.mxu0 0.0
        %529 = vmatprep.subr.mxu0 0.0
        %530 = vmatpush1.msra.mxu0 0.0
        %531 = vmatprep.subr.mxu0 0.0
        %532 = vmatpush1.msra.mxu0 0.0
        %533 = vmatprep.subr.mxu0 0.0
        %534 = vmatpush1.msra.mxu0 0.0
        %535 = vmatprep.subr.mxu0 0.0
        %536 = vmatpush1.msra.mxu0 0.0
        %537 = vmatprep.subr.mxu0 0.0
        %538 = vmatpush1.msra.mxu0 0.0
        %539 = vmatprep.subr.mxu0 0.0
        %540 = vmatpush1.msra.mxu0 0.0
        %541 = vmatprep.subr.mxu0 0.0
        %542 = vmatpush1.msra.mxu0 0.0
        %543 = vmatprep.subr.mxu0 0.0
        %544 = vmatpush1.msra.mxu0 %v203
        %545 = vmatprep.subr.mxu0 0.0
        %546 = vmatpush1.msra.mxu0 %v202
        %547 = vmatprep.subr.mxu0 0.0
        %548 = vmatpush1.msra.mxu0 %v201
        %549 = vmatprep.subr.mxu0 0.0
        %550 = vmatpush1.msra.mxu0 %v200
        %551 = vmatprep.subr.mxu0 0.0
        %552 = vmatpush1.msra.mxu0 %v199
        %553 = vmatprep.subr.mxu0 0.0
        %554 = vmatpush1.msra.mxu0 %v198
        %555 = vmatprep.subr.mxu0 0.0
        %556 = vmatpush1.msra.mxu0 %v197
        %557 = vmatprep.subr.mxu0 0.0
        %558 = vmatpush1.msra.mxu0 %v196
        %559 = vmatprep.subr.mxu0 0.0
        %560 = vmatpush2.msra.mxu0 0.0
        %561 = vmatprep.subr.mxu0 0.0
        %562 = vmatpush2.msra.mxu0 0.0
        %563 = vmatprep.subr.mxu0 0.0
        %564 = vmatpush2.msra.mxu0 0.0
        %565 = vmatprep.subr.mxu0 0.0
        %566 = vmatpush2.msra.mxu0 0.0
        %567 = vmatprep.subr.mxu0 0.0
        %568 = vmatpush2.msra.mxu0 0.0
        %569 = vmatprep.subr.mxu0 0.0
        %570 = vmatpush2.msra.mxu0 0.0
        %571 = vmatprep.subr.mxu0 0.0
        %572 = vmatpush2.msra.mxu0 0.0
        %573 = vmatprep.subr.mxu0 0.0
        %574 = vmatpush2.msra.mxu0 0.0
        %575 = vmatprep.subr.mxu0 0.0
        %576 = vmatpush2.msra.mxu0 0.0
        %577 = vmatprep.subr.mxu0 0.0
        %578 = vmatpush2.msra.mxu0 0.0
        %579 = vmatprep.subr.mxu0 0.0
        %580 = vmatpush2.msra.mxu0 0.0
        %581 = vmatprep.subr.mxu0 0.0
        %582 = vmatpush2.msra.mxu0 0.0
        %583 = vmatprep.subr.mxu0 0.0
        %584 = vmatpush2.msra.mxu0 0.0
        %585 = vmatprep.subr.mxu0 0.0
        %586 = vmatpush2.msra.mxu0 0.0
        %587 = vmatprep.subr.mxu0 0.0
        %588 = vmatpush2.msra.mxu0 0.0
        %589 = vmatprep.subr.mxu0 0.0
        %590 = vmatpush2.msra.mxu0 0.0
        %591 = vmatprep.mubr.f32.mxu0 0.0
        %592 = vmatmul.mubr.f32.gmra.mxu0 %v432
        %v593 = vpop.f32.mrf.mxu0
        %v594 = vadd.f32 0.0, %v593
        %v595 = vpop.f32.mrf.mxu0
        %596 = vmatprep.mubr.f32.mxu0 0.0
        %597 = vmatmul.mubr.f32.gmra.mxu0 %v435
        %v598 = vpop.f32.mrf.mxu0
        %v599 = vadd.f32 0.0, %v598
        %v600 = vpop.f32.mrf.mxu0
        %601 = vmatprep.mubr.f32.mxu0 0.0
        %602 = vmatmul.mubr.f32.gmra.mxu0 %v438
        %v603 = vpop.f32.mrf.mxu0
        %v604 = vadd.f32 0.0, %v603
        %v605 = vpop.f32.mrf.mxu0
        %606 = vmatprep.mubr.f32.mxu0 0.0
        %607 = vmatmul.mubr.f32.gmra.mxu0 %v441
        %v608 = vpop.f32.mrf.mxu0
        %v609 = vadd.f32 0.0, %v608
        %v610 = vpop.f32.mrf.mxu0
        %611 = vmatprep.mubr.f32.mxu0 0.0
        %612 = vmatmul.mubr.f32.gmra.mxu0 %v444
        %v613 = vpop.f32.mrf.mxu0
        %v614 = vadd.f32 0.0, %v613
        %v615 = vpop.f32.mrf.mxu0
        %616 = vmatprep.mubr.f32.mxu0 0.0
        %617 = vmatmul.mubr.f32.gmra.mxu0 %v447
        %v618 = vpop.f32.mrf.mxu0
        %v619 = vadd.f32 0.0, %v618
        %v620 = vpop.f32.mrf.mxu0
        %621 = vmatprep.mubr.f32.mxu0 0.0
        %622 = vmatmul.mubr.f32.gmra.mxu0 %v450
        %v623 = vpop.f32.mrf.mxu0
        %v624 = vadd.f32 0.0, %v623
        %v625 = vpop.f32.mrf.mxu0
        %626 = vmatprep.mubr.f32.mxu0 0.0
        %627 = vmatmul.mubr.f32.gmra.mxu0 %v453
        %v628 = vpop.f32.mrf.mxu0
        %v629 = vadd.f32 0.0, %v628
        %v630 = vpop.f32.mrf.mxu0
        %631 = vmatprep.mubr.f32.mxu0 0.0
        %632 = vmatmul.mubr.f32.gmra.mxu0 %v456
        %v633 = vpop.f32.mrf.mxu0
        %v634 = vadd.f32 0.0, %v633
        %v635 = vpop.f32.mrf.mxu0
        %636 = vmatprep.mubr.f32.mxu0 0.0
        %637 = vmatmul.mubr.f32.gmra.mxu0 %v459
        %v638 = vpop.f32.mrf.mxu0
        %v639 = vadd.f32 0.0, %v638
        %v640 = vpop.f32.mrf.mxu0
        %641 = vmatprep.mubr.f32.mxu0 0.0
        %642 = vmatmul.mubr.f32.gmra.mxu0 %v462
        %v643 = vpop.f32.mrf.mxu0
        %v644 = vadd.f32 0.0, %v643
        %v645 = vpop.f32.mrf.mxu0
        %646 = vmatprep.mubr.f32.mxu0 0.0
        %647 = vmatmul.mubr.f32.gmra.mxu0 %v465
        %v648 = vpop.f32.mrf.mxu0
        %v649 = vadd.f32 0.0, %v648
        %v650 = vpop.f32.mrf.mxu0
        %651 = vmatprep.mubr.f32.mxu0 0.0
        %652 = vmatmul.mubr.f32.gmra.mxu0 %v468
        %v653 = vpop.f32.mrf.mxu0
        %v654 = vadd.f32 0.0, %v653
        %v655 = vpop.f32.mrf.mxu0
        %656 = vmatprep.mubr.f32.mxu0 0.0
        %657 = vmatmul.mubr.f32.gmra.mxu0 %v471
        %v658 = vpop.f32.mrf.mxu0
        %v659 = vadd.f32 0.0, %v658
        %v660 = vpop.f32.mrf.mxu0
        %661 = vmatprep.mubr.f32.mxu0 0.0
        %662 = vmatmul.mubr.f32.gmra.mxu0 %v474
        %v663 = vpop.f32.mrf.mxu0
        %v664 = vadd.f32 0.0, %v663
        %v665 = vpop.f32.mrf.mxu0
        %666 = vmatprep.mubr.f32.mxu0 0.0
        %667 = vmatmul.mubr.f32.gmra.mxu0 %v477
        %v668 = vpop.f32.mrf.mxu0
        %v669 = vadd.f32 0.0, %v668
        %v670 = vpop.f32.mrf.mxu0
        %671 = vmatprep.mubr.f32.mxu0 0.0
        %672 = vmatmul.mubr.f32.gmra.mxu0 %v480
        %v673 = vpop.f32.mrf.mxu0
        %v674 = vadd.f32 0.0, %v673
        %v675 = vpop.f32.mrf.mxu0
        %676 = vmatprep.mubr.f32.mxu0 0.0
        %677 = vmatmul.mubr.f32.gmra.mxu0 %v483
        %v678 = vpop.f32.mrf.mxu0
        %v679 = vadd.f32 0.0, %v678
        %v680 = vpop.f32.mrf.mxu0
        %681 = vmatprep.mubr.f32.mxu0 0.0
        %682 = vmatmul.mubr.f32.gmra.mxu0 %v486
        %v683 = vpop.f32.mrf.mxu0
        %v684 = vadd.f32 0.0, %v683
        %v685 = vpop.f32.mrf.mxu0
        %686 = vmatprep.mubr.f32.mxu0 0.0
        %687 = vmatmul.mubr.f32.gmra.mxu0 %v489
        %v688 = vpop.f32.mrf.mxu0
        %v689 = vadd.f32 0.0, %v688
        %v690 = vpop.f32.mrf.mxu0
        %691 = vmatprep.mubr.f32.mxu0 0.0
        %692 = vmatmul.mubr.f32.gmra.mxu0 %v492
        %v693 = vpop.f32.mrf.mxu0
        %v694 = vadd.f32 0.0, %v693
        %v695 = vpop.f32.mrf.mxu0
        %696 = vmatprep.mubr.f32.mxu0 0.0
        %697 = vmatmul.mubr.f32.gmra.mxu0 %v495
        %v698 = vpop.f32.mrf.mxu0
        %v699 = vadd.f32 0.0, %v698
        %v700 = vpop.f32.mrf.mxu0
        %701 = vmatprep.mubr.f32.mxu0 0.0
        %702 = vmatmul.mubr.f32.gmra.mxu0 %v498
        %v703 = vpop.f32.mrf.mxu0
        %v704 = vadd.f32 0.0, %v703
        %v705 = vpop.f32.mrf.mxu0
        %706 = vmatprep.mubr.f32.mxu0 0.0
        %707 = vmatmul.mubr.f32.gmra.mxu0 %v501
        %v708 = vpop.f32.mrf.mxu0
        %v709 = vadd.f32 0.0, %v708
        %v710 = vpop.f32.mrf.mxu0
        %711 = vmatprep.mubr.f32.mxu0 0.0
        %712 = vmatmul.mubr.f32.gmra.mxu0 %v504
        %v713 = vpop.f32.mrf.mxu0
        %v714 = vadd.f32 0.0, %v713
        %v715 = vpop.f32.mrf.mxu0
        %716 = vmatprep.mubr.f32.mxu0 0.0
        %717 = vmatmul.mubr.f32.gmra.mxu0 %v507
        %v718 = vpop.f32.mrf.mxu0
        %v719 = vadd.f32 0.0, %v718
        %v720 = vpop.f32.mrf.mxu0
        %721 = vmatprep.mubr.f32.mxu0 0.0
        %722 = vmatmul.mubr.f32.gmra.mxu0 %v510
        %v723 = vpop.f32.mrf.mxu0
        %v724 = vadd.f32 0.0, %v723
        %v725 = vpop.f32.mrf.mxu0
        %726 = vmatprep.mubr.f32.mxu0 0.0
        %727 = vmatmul.mubr.f32.gmra.mxu0 %v513
        %v728 = vpop.f32.mrf.mxu0
        %v729 = vadd.f32 0.0, %v728
        %v730 = vpop.f32.mrf.mxu0
        %731 = vmatprep.mubr.f32.mxu0 0.0
        %732 = vmatmul.mubr.f32.gmra.mxu0 %v516
        %v733 = vpop.f32.mrf.mxu0
        %v734 = vadd.f32 0.0, %v733
        %v735 = vpop.f32.mrf.mxu0
        %736 = vmatprep.mubr.f32.mxu0 0.0
        %737 = vmatmul.mubr.f32.gmra.mxu0 %v519
        %v738 = vpop.f32.mrf.mxu0
        %v739 = vadd.f32 0.0, %v738
        %v740 = vpop.f32.mrf.mxu0
        %741 = vmatprep.mubr.f32.mxu0 0.0
        %742 = vmatmul.mubr.f32.gmra.mxu0 %v522
        %v743 = vpop.f32.mrf.mxu0
        %v744 = vadd.f32 0.0, %v743
        %v745 = vpop.f32.mrf.mxu0
        %746 = vmatprep.mubr.f32.mxu0 0.0
        %747 = vmatmul.mubr.f32.gmra.mxu0 %v525
        %v748 = vpop.f32.mrf.mxu0
        %v749 = vadd.f32 0.0, %v748
        %v750 = vpop.f32.mrf.mxu0
        %751 = vdwg.mxu0
        %v752 = vld [vmem:[%s193] sm:$0xff]
        %v753 = vld [vmem:[%s193 + $0x8] sm:$0xff]
        %v754 = vld [vmem:[%s193 + $0x10] sm:$0xff]
        %v755 = vld [vmem:[%s193 + $0x18] sm:$0xff]
        %v760 = vcombine.high %v752, %v752
        %v762 = vunpack.c.l.s4 1966171168
        %v763 = vunpack.c.0.s8 %v762
        %v764 = vlaneseq
        %v765 = vshrl.u32 %v764, 7
        %v766 = vsub.s32 %v763, %v765
        %v767 = vrot.slane %v752, %v766
        %v769 = vunpack.c.l.s4 1966171168
        %v770 = vunpack.c.0.s8 %v769
        %v771 = vlaneseq
        %v772 = vshrl.u32 %v771, 7
        %v773 = vsub.s32 %v770, %v772
        %v774 = vrot.slane %v760, %v773
        %v775 = vcombine.high %v767, %v767
        %v776 = vcombine.high %v774, %v774
        %v778 = vunpack.c.l.s4 1966171168
        %v779 = vunpack.c.0.s8 %v778
        %v780 = vlaneseq
        %v781 = vshrl.u32 %v780, 7
        %v782 = vsub.s32 %v779, %v781
        %v783 = vrot.slane %v767, %v782
        %v785 = vunpack.c.l.s4 1966171168
        %v786 = vunpack.c.0.s8 %v785
        %v787 = vlaneseq
        %v788 = vshrl.u32 %v787, 7
        %v789 = vsub.s32 %v786, %v788
        %v790 = vrot.slane %v774, %v789
        %v792 = vunpack.c.l.s4 1966171168
        %v793 = vunpack.c.0.s8 %v792
        %v794 = vlaneseq
        %v795 = vshrl.u32 %v794, 7
        %v796 = vsub.s32 %v793, %v795
        %v797 = vrot.slane %v775, %v796
        %v799 = vunpack.c.l.s4 1966171168
        %v800 = vunpack.c.0.s8 %v799
        %v801 = vlaneseq
        %v802 = vshrl.u32 %v801, 7
        %v803 = vsub.s32 %v800, %v802
        %v804 = vrot.slane %v776, %v803
        %v805 = vcombine.high %v783, %v783
        %v806 = vcombine.high %v790, %v790
        %v807 = vcombine.high %v797, %v797
        %v808 = vcombine.high %v804, %v804
        %v809 = vcombine.high %v753, %v753
        %v811 = vunpack.c.l.s4 1966171168
        %v812 = vunpack.c.0.s8 %v811
        %v813 = vlaneseq
        %v814 = vshrl.u32 %v813, 7
        %v815 = vsub.s32 %v812, %v814
        %v816 = vrot.slane %v753, %v815
        %v818 = vunpack.c.l.s4 1966171168
        %v819 = vunpack.c.0.s8 %v818
        %v820 = vlaneseq
        %v821 = vshrl.u32 %v820, 7
        %v822 = vsub.s32 %v819, %v821
        %v823 = vrot.slane %v809, %v822
        %v824 = vcombine.high %v816, %v816
        %v825 = vcombine.high %v823, %v823
        %v827 = vunpack.c.l.s4 1966171168
        %v828 = vunpack.c.0.s8 %v827
        %v829 = vlaneseq
        %v830 = vshrl.u32 %v829, 7
        %v831 = vsub.s32 %v828, %v830
        %v832 = vrot.slane %v816, %v831
        %v834 = vunpack.c.l.s4 1966171168
        %v835 = vunpack.c.0.s8 %v834
        %v836 = vlaneseq
        %v837 = vshrl.u32 %v836, 7
        %v838 = vsub.s32 %v835, %v837
        %v839 = vrot.slane %v823, %v838
        %v841 = vunpack.c.l.s4 1966171168
        %v842 = vunpack.c.0.s8 %v841
        %v843 = vlaneseq
        %v844 = vshrl.u32 %v843, 7
        %v845 = vsub.s32 %v842, %v844
        %v846 = vrot.slane %v824, %v845
        %v848 = vunpack.c.l.s4 1966171168
        %v849 = vunpack.c.0.s8 %v848
        %v850 = vlaneseq
        %v851 = vshrl.u32 %v850, 7
        %v852 = vsub.s32 %v849, %v851
        %v853 = vrot.slane %v825, %v852
        %v854 = vcombine.high %v832, %v832
        %v855 = vcombine.high %v839, %v839
        %v856 = vcombine.high %v846, %v846
        %v857 = vcombine.high %v853, %v853
        %v858 = vcombine.high %v754, %v754
        %v860 = vunpack.c.l.s4 1966171168
        %v861 = vunpack.c.0.s8 %v860
        %v862 = vlaneseq
        %v863 = vshrl.u32 %v862, 7
        %v864 = vsub.s32 %v861, %v863
        %v865 = vrot.slane %v754, %v864
        %v867 = vunpack.c.l.s4 1966171168
        %v868 = vunpack.c.0.s8 %v867
        %v869 = vlaneseq
        %v870 = vshrl.u32 %v869, 7
        %v871 = vsub.s32 %v868, %v870
        %v872 = vrot.slane %v858, %v871
        %v873 = vcombine.high %v865, %v865
        %v874 = vcombine.high %v872, %v872
        %v876 = vunpack.c.l.s4 1966171168
        %v877 = vunpack.c.0.s8 %v876
        %v878 = vlaneseq
        %v879 = vshrl.u32 %v878, 7
        %v880 = vsub.s32 %v877, %v879
        %v881 = vrot.slane %v865, %v880
        %v883 = vunpack.c.l.s4 1966171168
        %v884 = vunpack.c.0.s8 %v883
        %v885 = vlaneseq
        %v886 = vshrl.u32 %v885, 7
        %v887 = vsub.s32 %v884, %v886
        %v888 = vrot.slane %v872, %v887
        %v890 = vunpack.c.l.s4 1966171168
        %v891 = vunpack.c.0.s8 %v890
        %v892 = vlaneseq
        %v893 = vshrl.u32 %v892, 7
        %v894 = vsub.s32 %v891, %v893
        %v895 = vrot.slane %v873, %v894
        %v897 = vunpack.c.l.s4 1966171168
        %v898 = vunpack.c.0.s8 %v897
        %v899 = vlaneseq
        %v900 = vshrl.u32 %v899, 7
        %v901 = vsub.s32 %v898, %v900
        %v902 = vrot.slane %v874, %v901
        %v903 = vcombine.high %v881, %v881
        %v904 = vcombine.high %v888, %v888
        %v905 = vcombine.high %v895, %v895
        %v906 = vcombine.high %v902, %v902
        %v907 = vcombine.high %v755, %v755
        %v909 = vunpack.c.l.s4 1966171168
        %v910 = vunpack.c.0.s8 %v909
        %v911 = vlaneseq
        %v912 = vshrl.u32 %v911, 7
        %v913 = vsub.s32 %v910, %v912
        %v914 = vrot.slane %v755, %v913
        %v916 = vunpack.c.l.s4 1966171168
        %v917 = vunpack.c.0.s8 %v916
        %v918 = vlaneseq
        %v919 = vshrl.u32 %v918, 7
        %v920 = vsub.s32 %v917, %v919
        %v921 = vrot.slane %v907, %v920
        %v922 = vcombine.high %v914, %v914
        %v923 = vcombine.high %v921, %v921
        %v925 = vunpack.c.l.s4 1966171168
        %v926 = vunpack.c.0.s8 %v925
        %v927 = vlaneseq
        %v928 = vshrl.u32 %v927, 7
        %v929 = vsub.s32 %v926, %v928
        %v930 = vrot.slane %v914, %v929
        %v932 = vunpack.c.l.s4 1966171168
        %v933 = vunpack.c.0.s8 %v932
        %v934 = vlaneseq
        %v935 = vshrl.u32 %v934, 7
        %v936 = vsub.s32 %v933, %v935
        %v937 = vrot.slane %v921, %v936
        %v939 = vunpack.c.l.s4 1966171168
        %v940 = vunpack.c.0.s8 %v939
        %v941 = vlaneseq
        %v942 = vshrl.u32 %v941, 7
        %v943 = vsub.s32 %v940, %v942
        %v944 = vrot.slane %v922, %v943
        %v946 = vunpack.c.l.s4 1966171168
        %v947 = vunpack.c.0.s8 %v946
        %v948 = vlaneseq
        %v949 = vshrl.u32 %v948, 7
        %v950 = vsub.s32 %v947, %v949
        %v951 = vrot.slane %v923, %v950
        %v952 = vcombine.high %v930, %v930
        %v953 = vcombine.high %v937, %v937
        %v954 = vcombine.high %v944, %v944
        %v955 = vcombine.high %v951, %v951
        %v956 = vlaneseq
        %v957 = vshrl.u32 %v956, 7
        %v958 = vsub.s32 0, %v957
        %v959 = vrot.slane %v783, %v958
        %v960 = vlaneseq
        %v961 = vshrl.u32 %v960, 7
        %v962 = vsub.s32 0, %v961
        %v963 = vrot.slane %v797, %v962
        %v964 = vlaneseq
        %v965 = vshrl.u32 %v964, 7
        %v966 = vsub.s32 0, %v965
        %v967 = vrot.slane %v805, %v966
        %v968 = vlaneseq
        %v969 = vshrl.u32 %v968, 7
        %v970 = vsub.s32 0, %v969
        %v971 = vrot.slane %v807, %v970
        %v972 = vlaneseq
        %v973 = vshrl.u32 %v972, 7
        %v974 = vsub.s32 0, %v973
        %v975 = vrot.slane %v790, %v974
        %v976 = vlaneseq
        %v977 = vshrl.u32 %v976, 7
        %v978 = vsub.s32 0, %v977
        %v979 = vrot.slane %v804, %v978
        %v980 = vlaneseq
        %v981 = vshrl.u32 %v980, 7
        %v982 = vsub.s32 0, %v981
        %v983 = vrot.slane %v806, %v982
        %v984 = vlaneseq
        %v985 = vshrl.u32 %v984, 7
        %v986 = vsub.s32 0, %v985
        %v987 = vrot.slane %v808, %v986
        %v988 = vlaneseq
        %v989 = vshrl.u32 %v988, 7
        %v990 = vsub.s32 0, %v989
        %v991 = vrot.slane %v832, %v990
        %v992 = vlaneseq
        %v993 = vshrl.u32 %v992, 7
        %v994 = vsub.s32 0, %v993
        %v995 = vrot.slane %v846, %v994
        %v996 = vlaneseq
        %v997 = vshrl.u32 %v996, 7
        %v998 = vsub.s32 0, %v997
        %v999 = vrot.slane %v854, %v998
        %v1000 = vlaneseq
        %v1001 = vshrl.u32 %v1000, 7
        %v1002 = vsub.s32 0, %v1001
        %v1003 = vrot.slane %v856, %v1002
        %v1004 = vlaneseq
        %v1005 = vshrl.u32 %v1004, 7
        %v1006 = vsub.s32 0, %v1005
        %v1007 = vrot.slane %v839, %v1006
        %v1008 = vlaneseq
        %v1009 = vshrl.u32 %v1008, 7
        %v1010 = vsub.s32 0, %v1009
        %v1011 = vrot.slane %v853, %v1010
        %v1012 = vlaneseq
        %v1013 = vshrl.u32 %v1012, 7
        %v1014 = vsub.s32 0, %v1013
        %v1015 = vrot.slane %v855, %v1014
        %v1016 = vlaneseq
        %v1017 = vshrl.u32 %v1016, 7
        %v1018 = vsub.s32 0, %v1017
        %v1019 = vrot.slane %v857, %v1018
        %v1020 = vlaneseq
        %v1021 = vshrl.u32 %v1020, 7
        %v1022 = vsub.s32 0, %v1021
        %v1023 = vrot.slane %v881, %v1022
        %v1024 = vlaneseq
        %v1025 = vshrl.u32 %v1024, 7
        %v1026 = vsub.s32 0, %v1025
        %v1027 = vrot.slane %v895, %v1026
        %v1028 = vlaneseq
        %v1029 = vshrl.u32 %v1028, 7
        %v1030 = vsub.s32 0, %v1029
        %v1031 = vrot.slane %v903, %v1030
        %v1032 = vlaneseq
        %v1033 = vshrl.u32 %v1032, 7
        %v1034 = vsub.s32 0, %v1033
        %v1035 = vrot.slane %v905, %v1034
        %v1036 = vlaneseq
        %v1037 = vshrl.u32 %v1036, 7
        %v1038 = vsub.s32 0, %v1037
        %v1039 = vrot.slane %v888, %v1038
        %v1040 = vlaneseq
        %v1041 = vshrl.u32 %v1040, 7
        %v1042 = vsub.s32 0, %v1041
        %v1043 = vrot.slane %v902, %v1042
        %v1044 = vlaneseq
        %v1045 = vshrl.u32 %v1044, 7
        %v1046 = vsub.s32 0, %v1045
        %v1047 = vrot.slane %v904, %v1046
        %v1048 = vlaneseq
        %v1049 = vshrl.u32 %v1048, 7
        %v1050 = vsub.s32 0, %v1049
        %v1051 = vrot.slane %v906, %v1050
        %v1052 = vlaneseq
        %v1053 = vshrl.u32 %v1052, 7
        %v1054 = vsub.s32 0, %v1053
        %v1055 = vrot.slane %v930, %v1054
        %v1056 = vlaneseq
        %v1057 = vshrl.u32 %v1056, 7
        %v1058 = vsub.s32 0, %v1057
        %v1059 = vrot.slane %v944, %v1058
        %v1060 = vlaneseq
        %v1061 = vshrl.u32 %v1060, 7
        %v1062 = vsub.s32 0, %v1061
        %v1063 = vrot.slane %v952, %v1062
        %v1064 = vlaneseq
        %v1065 = vshrl.u32 %v1064, 7
        %v1066 = vsub.s32 0, %v1065
        %v1067 = vrot.slane %v954, %v1066
        %v1068 = vlaneseq
        %v1069 = vshrl.u32 %v1068, 7
        %v1070 = vsub.s32 0, %v1069
        %v1071 = vrot.slane %v937, %v1070
        %v1072 = vlaneseq
        %v1073 = vshrl.u32 %v1072, 7
        %v1074 = vsub.s32 0, %v1073
        %v1075 = vrot.slane %v951, %v1074
        %v1076 = vlaneseq
        %v1077 = vshrl.u32 %v1076, 7
        %v1078 = vsub.s32 0, %v1077
        %v1079 = vrot.slane %v953, %v1078
        %v1080 = vlaneseq
        %v1081 = vshrl.u32 %v1080, 7
        %v1082 = vsub.s32 0, %v1081
        %v1083 = vrot.slane %v955, %v1082
        %v1116 = vadd.f32 %v594, %v959
        %v1117 = vadd.f32 %v599, %v963
        %v1118 = vadd.f32 %v604, %v967
        %v1119 = vadd.f32 %v609, %v971
        %v1120 = vadd.f32 %v614, %v975
        %v1121 = vadd.f32 %v619, %v979
        %v1122 = vadd.f32 %v624, %v983
        %v1123 = vadd.f32 %v629, %v987
        %v1124 = vadd.f32 %v634, %v991
        %v1125 = vadd.f32 %v639, %v995
        %v1126 = vadd.f32 %v644, %v999
        %v1127 = vadd.f32 %v649, %v1003
        %v1128 = vadd.f32 %v654, %v1007
        %v1129 = vadd.f32 %v659, %v1011
        %v1130 = vadd.f32 %v664, %v1015
        %v1131 = vadd.f32 %v669, %v1019
        %v1132 = vadd.f32 %v674, %v1023
        %v1133 = vadd.f32 %v679, %v1027
        %v1134 = vadd.f32 %v684, %v1031
        %v1135 = vadd.f32 %v689, %v1035
        %v1136 = vadd.f32 %v694, %v1039
        %v1137 = vadd.f32 %v699, %v1043
        %v1138 = vadd.f32 %v704, %v1047
        %v1139 = vadd.f32 %v709, %v1051
        %v1140 = vadd.f32 %v714, %v1055
        %v1141 = vadd.f32 %v719, %v1059
        %v1142 = vadd.f32 %v724, %v1063
        %v1143 = vadd.f32 %v729, %v1067
        %v1144 = vadd.f32 %v734, %v1071
        %v1145 = vadd.f32 %v739, %v1075
        %v1146 = vadd.f32 %v744, %v1079
        %v1147 = vadd.f32 %v749, %v1083
        %1148 = vst [vmem:[%s182] sm:$0xff] %v1116
        %1149 = vst [vmem:[%s182 + $0x8] sm:$0xff] %v1117
        %1150 = vst [vmem:[%s182 + $0x10] sm:$0xff] %v1118
        %1151 = vst [vmem:[%s182 + $0x18] sm:$0xff] %v1119
        %1152 = vst [vmem:[%s182 + $0x20] sm:$0xff] %v1120
        %1153 = vst [vmem:[%s182 + $0x28] sm:$0xff] %v1121
        %1154 = vst [vmem:[%s182 + $0x30] sm:$0xff] %v1122
        %1155 = vst [vmem:[%s182 + $0x38] sm:$0xff] %v1123
        %1156 = vst [vmem:[%s182 + $0x40] sm:$0xff] %v1124
        %1157 = vst [vmem:[%s182 + $0x48] sm:$0xff] %v1125
        %1158 = vst [vmem:[%s182 + $0x50] sm:$0xff] %v1126
        %1159 = vst [vmem:[%s182 + $0x58] sm:$0xff] %v1127
        %1160 = vst [vmem:[%s182 + $0x60] sm:$0xff] %v1128
        %1161 = vst [vmem:[%s182 + $0x68] sm:$0xff] %v1129
        %1162 = vst [vmem:[%s182 + $0x70] sm:$0xff] %v1130
        %1163 = vst [vmem:[%s182 + $0x78] sm:$0xff] %v1131
        %1164 = vst [vmem:[%s182 + $0x80] sm:$0xff] %v1132
        %1165 = vst [vmem:[%s182 + $0x88] sm:$0xff] %v1133
        %1166 = vst [vmem:[%s182 + $0x90] sm:$0xff] %v1134
        %1167 = vst [vmem:[%s182 + $0x98] sm:$0xff] %v1135
        %1168 = vst [vmem:[%s182 + $0xa0] sm:$0xff] %v1136
        %1169 = vst [vmem:[%s182 + $0xa8] sm:$0xff] %v1137
        %1170 = vst [vmem:[%s182 + $0xb0] sm:$0xff] %v1138
        %1171 = vst [vmem:[%s182 + $0xb8] sm:$0xff] %v1139
        %1172 = vst [vmem:[%s182 + $0xc0] sm:$0xff] %v1140
        %1173 = vst [vmem:[%s182 + $0xc8] sm:$0xff] %v1141
        %1174 = vst [vmem:[%s182 + $0xd0] sm:$0xff] %v1142
        %1175 = vst [vmem:[%s182 + $0xd8] sm:$0xff] %v1143
        %1176 = vst [vmem:[%s182 + $0xe0] sm:$0xff] %v1144
        %1177 = vst [vmem:[%s182 + $0xe8] sm:$0xff] %v1145
        %1178 = vst [vmem:[%s182 + $0xf0] sm:$0xff] %v1146
        %1179 = vst [vmem:[%s182 + $0xf8] sm:$0xff] %v1147
        %s1180 = sand.u32 %s100, 1
        %s1181 = scalar_lea.sflag [#allocation5], %s1180
        %s1182 = sand.u32 %s100, 1
        %s1183 = smul.addr %s1182, 256
        %s1184 = scalar_lea.vmem [#allocation4], %s1183
        // Predicated region
        $region33: #{tpu_custom_call.1} parent=31 // pred_check
          %p1185 = pneg %p110
        $region34: #{tpu_custom_call.1} parent=31 // pred_check_branch
          %1187 = sbr.rel (%p1185) target = $region36
        $region35: #{tpu_custom_call.1} parent=31 // pred_region
          %s1188 = smul.u32 32, %s19
          %s1190 = ssub.s32 4096, 4096
          %1191 = vsyncadd %s1181, %s1190
          %s1192 = smul.addr %s1188, 128
          %s1193 = scalar_lea.hbm %s4, %s1192
          %s1194 = sshll.u32 %s1184, 4
          %s1195 = int_to_ptr.vmem [resolvable:$true] %s1194
          %1200 = dma.vmem_to_hbm [thread:$0]  %s1195, 4096, %s1193, %s1181, 128, 128, 8
        $region36: #{tpu_custom_call.1} parent=31 // pred_fallthru
          _
      $region32: #{tpu_custom_call.1} parent=5 // pred_fallthru
        _
      %p1201 = scmp.le.s32.totalorder 2, %s14
      // Predicated region
      $region37: #{tpu_custom_call.1} parent=5 // pred_check
        %p1202 = pneg %p1201
      $region38: #{tpu_custom_call.1} parent=5 // pred_check_branch
        %1204 = sbr.rel (%p1202) target = $region40
      $region39: #{tpu_custom_call.1} parent=5 // pred_region
        %s1205 = ssub.s32 %s14, 2
        // Predicated region
        $region41: #{tpu_custom_call.1} parent=39 // pred_check
          %p1206 = pneg %p116
        $region42: #{tpu_custom_call.1} parent=39 // pred_check_branch
          %1208 = sbr.rel (%p1206) target = $region44
        $region43: #{tpu_custom_call.1} parent=39 // pred_region
          %s1209 = sand.u32 %s101, 1
          %s1210 = scalar_lea.sflag [#allocation5], %s1209
          %s1211 = sand.u32 %s101, 1
          %s1212 = smul.addr %s1211, 256
          %s1213 = scalar_lea.vmem [#allocation4], %s1212
          %1214 = dma.done %s1210, 4096
        $region44: #{tpu_custom_call.1} parent=39 // pred_fallthru
          _
      $region40: #{tpu_custom_call.1} parent=5 // pred_fallthru
        _
    $region6: #{tpu_custom_call.1} parent=1 // loop_footer
      %s18 = sadd.s32 1, %s14
    $region7: #{tpu_custom_call.1} parent=1 // loop_footer_branch
      %13 = sbr.rel target = $region3
    $region8: #{tpu_custom_call.1} parent=1 // loop_exit
      _
    %1215 = vsyncpa [#allocation5], 1
    %s1216 = scalar_lea.sflag [#allocation5], 1
    %1217 = vsyncpa %s1216, 1

</llo_original>
